<compile_context>
chip_gen: v7x
topology: tpu7x:2x2x1
jax: 0.10.0
libtpu: 0.0.40
codegen_flags: <defaults>
</compile_context>

<pallas_src>
import jax
import jax.numpy as jnp
from jax.experimental import pallas as pl
from jax.experimental.pallas import tpu as pltpu

_LANE = 128
_SUBLANE = 8
_X_TILE_BYTES = 4 * 1024 * 1024   # per-tile x budget -> ~16 MiB total with dbl-buffered in+out
_MAX_BLOCK_ROWS = 1024


def _round_up(n, m):
    return ((n + m - 1) // m) * m


def _layer_scale_kernel(x_ref, g_ref, o_ref):
    # x_ref: [TM, Dp] row tile; g_ref: [1, Dp] gamma broadcast across rows.
    x = x_ref[...].astype(jnp.float32)
    g = g_ref[...].astype(jnp.float32)
    o_ref[...] = (x * g).astype(o_ref.dtype)


@jax.jit
def layer_scale(x, gamma):
    """LayerScale forward: x * gamma, gamma of shape (dim,) broadcast on last axis."""
    orig_shape = x.shape
    D = orig_shape[-1]
    M = x.size // D
    itemsize = jnp.dtype(x.dtype).itemsize

    x2 = x.reshape(M, D)

    # --- lane packing: make the last (lane) dim a multiple of 128 when cheap ---
    if D < _LANE and _LANE % D == 0:
        pack = _LANE // D
    else:
        pack = 1

    M_pack = _round_up(M, pack)
    if M_pack != M:
        x2 = jnp.pad(x2, ((0, M_pack - M), (0, 0)))
    Mp = M_pack // pack           # packed row count
    Dp = pack * D                 # packed lane width (>= 128 when pack > 1)
    xp = x2.reshape(Mp, Dp) if pack > 1 else x2

    # --- row tiling: largest sublane-aligned tile within the VMEM budget ---
    row_bytes = Dp * itemsize
    tm = max(_SUBLANE, (_X_TILE_BYTES // row_bytes) // _SUBLANE * _SUBLANE)
    tm = min(tm, _MAX_BLOCK_ROWS, _round_up(Mp, _SUBLANE))

    Mp_pad = _round_up(Mp, tm)
    if Mp_pad != Mp:
        xp = jnp.pad(xp, ((0, Mp_pad - Mp), (0, 0)))

    # gamma tiled across the packed lane axis so lane j*D+d scales with gamma[d].
    g_row = gamma.reshape(1, D).astype(x.dtype)
    if pack > 1:
        g_row = jnp.tile(g_row, (1, pack))

    grid = (Mp_pad // tm,)
    bytes_accessed = 2 * Mp_pad * Dp * itemsize + Dp * itemsize

    out = pl.pallas_call(
        _layer_scale_kernel,
        out_shape=jax.ShapeDtypeStruct((Mp_pad, Dp), x.dtype),
        grid_spec=pl.GridSpec(
            grid=grid,
            in_specs=[
                pl.BlockSpec((tm, Dp), lambda i: (i, 0)),   # x row tile
                pl.BlockSpec((1, Dp), lambda i: (0, 0)),    # gamma (resident)
            ],
            out_specs=pl.BlockSpec((tm, Dp), lambda i: (i, 0)),
        ),
        compiler_params=pltpu.CompilerParams(
            dimension_semantics=("parallel",),
            vmem_limit_bytes=32 * 1024 * 1024,
        ),
        cost_estimate=pl.CostEstimate(
            flops=Mp_pad * Dp, transcendentals=0, bytes_accessed=bytes_accessed),
    )(xp, g_row)

    # Undo padding / packing: [Mp_pad, Dp] -> [M, D] -> original shape.
    out = out[:Mp]
    if pack > 1:
        out = out.reshape(M_pack, D)
    out = out[:M].reshape(orig_shape)
    return out


if __name__ == "__main__":
    key = jax.random.PRNGKey(0)

    # Case 1: small channel dim (exercises the lane-packing path), dim=32.
    B, N, D = 2, 8, 32
    kx, kg, kx2, kg2 = jax.random.split(key, 4)
    x = jax.random.normal(kx, (B, N, D), dtype=jnp.float32)
    # gamma is nn.Parameter(init_values * ones(dim)); perturb it so the
    # correctness check is non-trivial (as after training).
    gamma = 1e-5 * jnp.ones((D,), jnp.float32) \
        + 0.1 * jax.random.normal(kg, (D,), jnp.float32)

    out = layer_scale(x, gamma)
    out = jax.block_until_ready(out)
    assert out.shape == x.shape
    ref = x * gamma                      # == PyTorch `x * self.gamma`
    assert jnp.allclose(out, ref, atol=1e-6, rtol=1e-6)

    # Case 2: lane-aligned channel dim (pack == 1 path), dim=128.
    B2, N2, D2 = 2, 8, 128
    x2 = jax.random.normal(kx2, (B2, N2, D2), dtype=jnp.float32)
    gamma2 = 1e-5 * jnp.ones((D2,), jnp.float32) \
        + 0.1 * jax.random.normal(kg2, (D2,), jnp.float32)
    out2 = jax.block_until_ready(layer_scale(x2, gamma2))
    assert out2.shape == x2.shape
    assert jnp.allclose(out2, x2 * gamma2, atol=1e-6, rtol=1e-6)

    print("KERNEL_OK")
</pallas_src>

<mosaic_0001>
module attributes {stable_mosaic.version = 11 : i64} {
  func.func @_layer_scale_kernel(%arg0: i32, %arg1: memref<8x128xf32, #tpu.memory_space<vmem>>, %arg2: memref<1x128xf32, #tpu.memory_space<vmem>>, %arg3: memref<8x128xf32, #tpu.memory_space<vmem>>) attributes {dimension_semantics = [#tpu.dimension_semantics<parallel>], iteration_bounds = array<i64: 1>, scalar_prefetch = 0 : i64, scratch_operands = 0 : i64, tpu.core_type = #tpu.core_type<tc>, window_params = [{transform_indices = @transform_0, window_bounds = array<i64: 8, 128>}, {pipeline_mode = #tpu.pipeline_mode<synchronous>, transform_indices = @transform_1, window_bounds = array<i64: 1, 128>}, {transform_indices = @transform_2, window_bounds = array<i64: 8, 128>}]} {
    %c0 = arith.constant 0 : index
    %c0_0 = arith.constant 0 : index
    %0 = vector.load %arg1[%c0, %c0_0] : memref<8x128xf32, #tpu.memory_space<vmem>>, vector<8x128xf32>
    %c0_1 = arith.constant 0 : index
    %c0_2 = arith.constant 0 : index
    %1 = vector.load %arg2[%c0_1, %c0_2] : memref<1x128xf32, #tpu.memory_space<vmem>>, vector<1x128xf32>
    %2 = vector.broadcast %1 : vector<1x128xf32> to vector<8x128xf32>
    %3 = arith.mulf %0, %2 : vector<8x128xf32>
    %c0_3 = arith.constant 0 : index
    %c0_4 = arith.constant 0 : index
    %4 = vector.load %arg3[%c0_3, %c0_4] : memref<8x128xf32, #tpu.memory_space<vmem>>, vector<8x128xf32>
    tpu.vector_store %arg3[%c0_3, %c0_4], %3 {strides = array<i32>} : memref<8x128xf32, #tpu.memory_space<vmem>>, vector<8x128xf32>,
    return
  }
  func.func @transform_0(%arg0: i32) -> (i32, i32) {
    %c0_i32 = arith.constant 0 : i32
    %c0_i32_0 = arith.constant 0 : i32
    return %arg0, %c0_i32 : i32, i32
  }
  func.func @transform_1(%arg0: i32) -> (i32, i32) {
    %c0_i32 = arith.constant 0 : i32
    %c0_i32_0 = arith.constant 0 : i32
    %c0_i32_1 = arith.constant 0 : i32
    return %c0_i32, %c0_i32_0 : i32, i32
  }
  func.func @transform_2(%arg0: i32) -> (i32, i32) {
    %c0_i32 = arith.constant 0 : i32
    %c0_i32_0 = arith.constant 0 : i32
    return %arg0, %c0_i32 : i32, i32
  }
}

</mosaic_0001>

<llo_original>
// kernel: layer_scale.1
$region0: #{layer_scale.1}
  #allocation0 [shape = 'u32[]', space=smem, size = 0x4, offset = 0x4, fixed_abs, tag = 'smem constant byte address 0x4 - core index']
  #allocation1 [shape = 'u32[144,128]{1,0:T(1,128)}', space=vmem, size = 0x12000, scoped, tag = 'internal scratch']
  %s0 = inlined_call_operand.vmem [shape: f32[8,128], index: 0, kind: input, shape index: {}]
  %s1 = inlined_call_operand.vmem [shape: f32[1,128], index: 1, kind: input, shape index: {}]
  %s2 = inlined_call_operand.vmem [shape: f32[8,128], index: 2, kind: output, shape index: {}]
  %s3 = sld [smem:[#allocation0]]
  $region18: #{layer_scale.1} parent=0
    _
  %s5 = ssub.s32 1, %s3
  %s6 = scalar_select 0, %s5, %s3
  // Predicated region
  $region2: #{layer_scale.1} parent=0 // pred_check
    _
  $region3: #{layer_scale.1} parent=0 // pred_check_branch
    %8 = sbr.rel (0) target = $region5
  $region4: #{layer_scale.1} parent=0 // pred_region
    _
  $region5: #{layer_scale.1} parent=0 // pred_fallthru
    _
  // Predicated region
  $region6: #{layer_scale.1} parent=0 // pred_check
    _
  $region7: #{layer_scale.1} parent=0 // pred_check_branch
    %10 = sbr.rel (0) target = $region9
  $region8: #{layer_scale.1} parent=0 // pred_region
    _
  $region9: #{layer_scale.1} parent=0 // pred_fallthru
    _
  %v11 = vld [vmem:[%s0] sm:$0xff]
  %v12 = vld [vmem:[%s1] sm:$0x1]
  %v14 = vlaneseq
  %v15 = vshrl.u32 %v14, 7
  %v16 = vsub.s32 0, %v15
  %v17 = vrot.slane %v12, %v16
  %v19 = vmul.f32 %v11, %v17
  %20 = vst [vmem:[%s2] sm:$0xff] %v19
  // Predicated region
  $region10: #{layer_scale.1} parent=0 // pred_check
    _
  $region11: #{layer_scale.1} parent=0 // pred_check_branch
    %22 = sbr.rel (0) target = $region13
  $region12: #{layer_scale.1} parent=0 // pred_region
    _
  $region13: #{layer_scale.1} parent=0 // pred_fallthru
    _
  // Predicated region
  $region14: #{layer_scale.1} parent=0 // pred_check
    _
  $region15: #{layer_scale.1} parent=0 // pred_check_branch
    %24 = sbr.rel (0) target = $region17
  $region16: #{layer_scale.1} parent=0 // pred_region
    _
  $region17: #{layer_scale.1} parent=0 // pred_fallthru
    _

</llo_original>
